<compile_context>
chip_gen: v6e
topology: v6e:2x2x1
jax: 0.10.0
libtpu: 0.0.40
codegen_flags: <defaults>
</compile_context>

<pallas_src>
import jax
import jax.numpy as jnp
from jax.experimental import pallas as pl
from jax.experimental.pallas import tpu as pltpu


# ------------------------------ Pallas kernel ------------------------------

def _silu(x):
    # x * sigmoid(x); reciprocal goes to the EUP slot (effectively free). f32 math.
    return x * pl.reciprocal(1.0 + jnp.exp(-x), approx=True)


def _make_bottleneck_kernel(TH, W, C1, Cmid, C2, add, num_r):
    """Fused cv1(1x1) -> cv2(3x3) -> (+x) for one (batch, row-band) grid step."""
    LIN = W * C1     # lane-dense input row width
    LMID = W * Cmid  # lane-dense cv1-output row width
    LOUT = W * C2    # lane-dense output row width

    def kernel(x_hbm, w1_ref, b1_ref, w2_ref, b2_ref, o_ref, xbuf, hbuf, sem):
        n = pl.program_id(0)
        r = pl.program_id(1)
        slot = r % 2

        def band_copy(row_block, s):
            # padded rows [row_block*TH, row_block*TH + TH + 2) of image n.
            return pltpu.make_async_copy(
                x_hbm.at[n, pl.ds(row_block * TH, TH + 2)], xbuf.at[s], sem.at[s])

        # --- double-buffered halo DMA over the (sequential) row-band axis ---
        @pl.when(r == 0)
        def _():
            band_copy(0, 0).start()                   # prime the first band
        if num_r > 1:
            @pl.when(r + 1 < num_r)
            def _():
                band_copy(r + 1, 1 - slot).start()    # prefetch next band
        band_copy(r, slot).wait()                      # wait for the current band

        xb = xbuf[slot]                                # (TH+2, W*C1) f32, lane-dense

        # --- cv1: 1x1 conv as ONE block-diagonal matmul + folded BN + SiLU ---
        h = jnp.dot(xb.astype(jnp.bfloat16), w1_ref[...],
                    preferred_element_type=jnp.float32)
        hbuf[...] = _silu(h + b1_ref[...])

        # cv2's zero padding applies to cv1's OUTPUT: zero the halo rows that lie
        # outside the image (only the first row of the first band / last row of the
        # last band).  Column padding is already folded into the banded cv2 weights.
        @pl.when(r == 0)
        def _():
            hbuf[0:1, :] = jnp.zeros((1, LMID), jnp.float32)

        @pl.when(r == num_r - 1)
        def _():
            hbuf[TH + 1:TH + 2, :] = jnp.zeros((1, LMID), jnp.float32)

        # --- cv2: 3x3 conv as THREE banded matmuls (one per kernel row dy) ---
        acc = jnp.dot(hbuf[0:TH, :].astype(jnp.bfloat16), w2_ref[0],
                      preferred_element_type=jnp.float32)
        acc = acc + jnp.dot(hbuf[1:TH + 1, :].astype(jnp.bfloat16), w2_ref[1],
                            preferred_element_type=jnp.float32)
        acc = acc + jnp.dot(hbuf[2:TH + 2, :].astype(jnp.bfloat16), w2_ref[2],
                            preferred_element_type=jnp.float32)
        y = _silu(acc + b2_ref[...])

        # --- optional residual (shortcut and c1 == c2), f32, lane-aligned ---
        if add:
            y = y + xb[1:TH + 1, :]

        o_ref[...] = y.astype(o_ref.dtype)

    return kernel


# ------------------------------ banded weight prep ------------------------------

def _build_banded_weights(w1, b1, w2, b2, W):
    """Fold the spatial structure of cv1/cv2 into lane-dense MXU weight matrices."""
    C1, Cmid = w1.shape
    C2 = w2.shape[-1]

    # cv1 as a block-diagonal (W*C1, W*Cmid) matrix: one matmul per row slab.
    eye = jnp.eye(W, dtype=w1.dtype)
    w1_bd = jnp.einsum("pq,ic->piqc", eye, w1).reshape(W * C1, W * Cmid)
    b1_bd = jnp.tile(b1.reshape(1, 1, Cmid), (1, W, 1)).reshape(1, W * Cmid)

    # cv2 as three banded (W*Cmid, W*C2) matrices (one per kernel row dy).  The band
    # encodes the dx taps; taps falling outside the image are zeroed, which is exactly
    # the 3x3 conv's zero padding along the width axis (row padding handled in-kernel).
    cols = jnp.arange(W)
    d = cols[:, None] - cols[None, :] + 1                       # (col, w_out) -> dx
    mask = ((d >= 0) & (d <= 2)).astype(w2.dtype)
    dxi = jnp.clip(d, 0, 2)

    def band(dy):
        taps = w2[dy][dxi] * mask[:, :, None, None]             # (W, W, Cmid, C2)
        return jnp.transpose(taps, (0, 2, 1, 3)).reshape(W * Cmid, W * C2)

    w2_bands = jnp.stack([band(0), band(1), band(2)], axis=0)   # (3, W*Cmid, W*C2)
    b2_bd = jnp.tile(b2.reshape(1, 1, C2), (1, W, 1)).reshape(1, W * C2)

    return (w1_bd.astype(jnp.bfloat16), b1_bd.astype(jnp.float32),
            w2_bands.astype(jnp.bfloat16), b2_bd.astype(jnp.float32))


# ------------------------------ tiling helpers ------------------------------

def _vmem_capacity_bytes():
    cap = 64 << 20          # conservative default (safe on v7x) if the query fails
    try:
        info = pltpu.get_tpu_info()
        cap = int(getattr(info, "vmem_capacity_bytes", cap))
    except Exception:
        pass
    return cap


def _pick_row_tile(H, W, C1, Cmid, C2, budget_bytes):
    """Largest band height TH with H % TH == 0 and (TH % 8 == 0 or TH == H) whose
    (lane-dense) VMEM estimate fits the generation-aware budget."""
    lane = 128

    def pad(c):
        return -(-c // lane) * lane

    def est(th):
        b = 0
        b += 2 * (th + 2) * pad(W * C1) * 4             # double-buffered halo band (f32)
        b += (th + 2) * pad(W * Cmid) * 4               # cv1-output scratch (f32)
        b += (th + 2) * pad(W * Cmid) * 4               # cv1 f32 value temp
        b += 2 * th * pad(W * C2) * 4                   # double-buffered output block
        b += 2 * th * pad(W * C2) * 4                   # acc / y temporaries
        b += pad(W * C1) * pad(W * Cmid) * 2            # cv1 block-diag weight (bf16)
        b += 3 * pad(W * Cmid) * pad(W * C2) * 2        # cv2 banded weights (bf16)
        return b

    cands = [h for h in range(H, 0, -1) if H % h == 0 and (h % 8 == 0 or h == H)]
    fitting = [c for c in cands if est(c) <= budget_bytes]
    if not fitting:
        # TODO(synk): add width tiling for very large W*C instead of this fallback.
        return min(cands)
    return fitting[0]


# ------------------------------ forward wrapper ------------------------------

def bottleneck_pruned_forward(x_nchw, params, *, vmem_budget_bytes=None, row_tile=None):
    N, C1, H, W = x_nchw.shape
    Cmid = params["cv1_w"].shape[1]
    C2 = params["cv2_w"].shape[-1]
    add = bool(params["add"]) and C1 == C2

    # TODO(synk): keep NHWC / (N, H, W*C) end-to-end in the surrounding graph to drop
    # these transpose + row-pad HBM passes (they can cost as much as the fused kernel).
    x = jnp.transpose(x_nchw, (0, 2, 3, 1))                       # NCHW -> NHWC
    x_pad = jnp.pad(x, ((0, 0), (1, 1), (0, 0), (0, 0)))          # row halo only
    x_pad = x_pad.reshape(N, H + 2, W * C1)                       # lane-dense rows

    cap = _vmem_capacity_bytes()
    budget = vmem_budget_bytes if vmem_budget_bytes is not None else max(cap * 3 // 8, 4 << 20)
    if row_tile is not None:
        assert H % row_tile == 0 and (row_tile % 8 == 0 or row_tile == H)
        TH = row_tile
    else:
        TH = _pick_row_tile(H, W, C1, Cmid, C2, budget)
    num_r = H // TH
    grid = (N, num_r)
    # TODO(synk): when N == 1 on v7x only one TensorCore is used (row-band axis must
    # stay sequential for the cross-step double buffering).

    w1_bd, b1_bd, w2_bands, b2_bd = _build_banded_weights(
        params["cv1_w"], params["cv1_b"], params["cv2_w"], params["cv2_b"], W)

    kernel = _make_bottleneck_kernel(TH, W, C1, Cmid, C2, add, num_r)

    out = pl.pallas_call(
        kernel,
        out_shape=jax.ShapeDtypeStruct((N, H, W * C2), x.dtype),
        grid=grid,
        in_specs=[
            pl.BlockSpec(memory_space=pl.ANY),                          # x_pad: manual DMA
            pl.BlockSpec((W * C1, W * Cmid), lambda n, r: (0, 0)),       # cv1 block-diag (bf16)
            pl.BlockSpec((1, W * Cmid), lambda n, r: (0, 0)),            # cv1 folded-BN bias
            pl.BlockSpec((3, W * Cmid, W * C2), lambda n, r: (0, 0, 0)), # cv2 bands (bf16)
            pl.BlockSpec((1, W * C2), lambda n, r: (0, 0)),              # cv2 folded-BN bias
        ],
        out_specs=pl.BlockSpec((None, TH, W * C2), lambda n, r: (n, r, 0)),
        scratch_shapes=[
            pltpu.VMEM((2, TH + 2, W * C1), x.dtype),     # double-buffered halo band
            pltpu.VMEM((TH + 2, W * Cmid), jnp.float32),  # cv1-output scratch (row-masked)
            pltpu.SemaphoreType.DMA((2,)),
        ],
        compiler_params=pltpu.CompilerParams(
            dimension_semantics=("parallel", "arbitrary"),
            vmem_limit_bytes=min(cap // 2, 128 << 20)),
    )(x_pad, w1_bd, b1_bd, w2_bands, b2_bd)

    return jnp.transpose(out.reshape(N, H, W, C2), (0, 3, 1, 2))   # back to NCHW


# ------------------------------ params (folded BN) ------------------------------

def _fold_bn(w, gamma, beta, mean, var, eps):
    """Fold eval-mode BatchNorm into a bias-free conv; w has Cout as its last axis."""
    scale = gamma / jnp.sqrt(var + eps)
    return w * scale, beta - mean * scale


def _make_conv_bn(key, cin, cout, k, eps):
    k1, k2, k3, k4, k5 = jax.random.split(key, 5)
    if k == 1:
        w = jax.random.normal(k1, (cin, cout), jnp.float32) / jnp.sqrt(cin)
    else:
        w = jax.random.normal(k1, (k, k, cin, cout), jnp.float32) / jnp.sqrt(cin * k * k)
    gamma = 0.5 + jax.random.uniform(k2, (cout,), jnp.float32)
    beta = 0.1 * jax.random.normal(k3, (cout,), jnp.float32)
    mean = 0.1 * jax.random.normal(k4, (cout,), jnp.float32)
    var = 0.5 + jax.random.uniform(k5, (cout,), jnp.float32)
    return _fold_bn(w, gamma, beta, mean, var, eps)


def init_bottleneck_params(key, c1, c2, c_, shortcut=True, g=1, eps=1e-3):
    # eps=1e-3 follows the YOLOv5 Conv/BatchNorm convention; use 1e-5 to match a
    # vanilla torch.nn.BatchNorm2d default.
    if g != 1:
        # TODO(synk): grouped 3x3 conv (g > 1) not implemented in the fused kernel.
        raise NotImplementedError("grouped conv (g > 1) not supported")
    k1, k2 = jax.random.split(key)
    cv1_w, cv1_b = _make_conv_bn(k1, c1, c_, 1, eps)
    cv2_w, cv2_b = _make_conv_bn(k2, c_, c2, 3, eps)
    return {"cv1_w": cv1_w, "cv1_b": cv1_b,
            "cv2_w": cv2_w, "cv2_b": cv2_b,
            "add": bool(shortcut and c1 == c2)}


# ------------------------------ pure-JAX reference ------------------------------

def _reference_forward(x_nchw, params):
    x = jnp.transpose(x_nchw, (0, 2, 3, 1))
    c1, c_ = params["cv1_w"].shape
    dn = ("NHWC", "HWIO", "NHWC")
    h = jax.lax.conv_general_dilated(x, params["cv1_w"].reshape(1, 1, c1, c_),
                                     (1, 1), "SAME", dimension_numbers=dn,
                                     precision=jax.lax.Precision.HIGHEST)
    h = h + params["cv1_b"]
    h = h * jax.nn.sigmoid(h)
    y = jax.lax.conv_general_dilated(h, params["cv2_w"], (1, 1), "SAME",
                                     dimension_numbers=dn,
                                     precision=jax.lax.Precision.HIGHEST)
    y = y + params["cv2_b"]
    y = y * jax.nn.sigmoid(y)
    if params["add"]:
        y = y + x
    return jnp.transpose(y, (0, 3, 1, 2))


def _check(out, ref):
    # bf16 MXU operands (deliberate) vs HIGHEST-precision f32 reference.
    assert bool(jnp.allclose(out, ref, atol=5e-2, rtol=5e-2)), (
        float(jnp.max(jnp.abs(out - ref))))


# ------------------------------ demo ------------------------------

if __name__ == "__main__":
    key = jax.random.PRNGKey(0)
    k_params, k_params2, k_x = jax.random.split(key, 3)

    # BottleneckPruned(c1=8, c2=8, c_=4, shortcut=True, g=1) — residual path.
    c1, c2, c_ = 8, 8, 4
    params = init_bottleneck_params(k_params, c1, c2, c_, shortcut=True)
    x = jax.random.normal(k_x, (2, c1, 16, 16), jnp.float32)   # NCHW, like PyTorch

    out = bottleneck_pruned_forward(x, params)
    jax.block_until_ready(out)
    assert out.shape == (2, c2, 16, 16), out.shape
    _check(out, _reference_forward(x, params))

    # Same module, forced multi-band tiling: exercises the double-buffered prefetch
    # and the per-band halo-row zeroing paths.
    out2 = bottleneck_pruned_forward(x, params, row_tile=8)
    jax.block_until_ready(out2)
    _check(out2, _reference_forward(x, params))

    # No-residual path (c1 != c2 -> add is False).
    params_nr = init_bottleneck_params(k_params2, 8, 16, 4, shortcut=True)
    out3 = bottleneck_pruned_forward(x, params_nr)
    jax.block_until_ready(out3)
    assert out3.shape == (2, 16, 16, 16), out3.shape
    _check(out3, _reference_forward(x, params_nr))

    print("KERNEL_OK")
</pallas_src>

<mosaic_0001>
module attributes {stable_mosaic.version = 11 : i64} {
  func.func @kernel(%arg0: i32, %arg1: i32, %arg2: memref<2x18x128xf32, #tpu.memory_space<any>>, %arg3: memref<128x64xbf16, #tpu.memory_space<vmem>>, %arg4: memref<1x64xf32, #tpu.memory_space<vmem>>, %arg5: memref<3x64x128xbf16, #tpu.memory_space<vmem>>, %arg6: memref<1x128xf32, #tpu.memory_space<vmem>>, %arg7: memref<1x16x128xf32, #tpu.memory_space<vmem>>, %arg8: memref<2x18x128xf32, #tpu.memory_space<vmem>>, %arg9: memref<18x64xf32, #tpu.memory_space<vmem>>, %arg10: memref<2x!tpu.dma_semaphore, #tpu.memory_space<semaphore_mem>>) attributes {dimension_semantics = [#tpu.dimension_semantics<parallel>, #tpu.dimension_semantics<arbitrary>], iteration_bounds = array<i64: 2, 1>, scalar_prefetch = 0 : i64, scratch_operands = 3 : i64, tpu.core_type = #tpu.core_type<tc>, window_params = [{}, {pipeline_mode = #tpu.pipeline_mode<synchronous>, transform_indices = @transform_1, window_bounds = array<i64: 128, 64>}, {pipeline_mode = #tpu.pipeline_mode<synchronous>, transform_indices = @transform_2, window_bounds = array<i64: 1, 64>}, {pipeline_mode = #tpu.pipeline_mode<synchronous>, transform_indices = @transform_3, window_bounds = array<i64: 3, 64, 128>}, {pipeline_mode = #tpu.pipeline_mode<synchronous>, transform_indices = @transform_4, window_bounds = array<i64: 1, 128>}, {transform_indices = @transform_5, window_bounds = array<i64: 1, 16, 128>}]} {
    %c2_i32 = arith.constant 2 : i32
    %c0_i32 = arith.constant 0 : i32
    %0 = arith.cmpi eq, %c2_i32, %c0_i32 : i32
    %c1_i32 = arith.constant 1 : i32
    %1 = arith.select %0, %c1_i32, %c2_i32 : i32
    %2 = arith.remsi %arg1, %1 : i32
    %c0_i32_0 = arith.constant 0 : i32
    %3 = arith.cmpi ne, %2, %c0_i32_0 : i32
    %c0_i32_1 = arith.constant 0 : i32
    %4 = arith.cmpi slt, %2, %c0_i32_1 : i32
    %c0_i32_2 = arith.constant 0 : i32
    %5 = arith.cmpi slt, %1, %c0_i32_2 : i32
    %6 = arith.xori %4, %5 : i1
    %7 = arith.andi %6, %3 : i1
    %8 = arith.addi %2, %1 : i32
    %9 = arith.select %7, %8, %2 : i32
    %c0_i32_3 = arith.constant 0 : i32
    %10 = arith.cmpi eq, %arg1, %c0_i32_3 : i32
    %11 = arith.extui %10 : i1 to i32
    %c0_i32_4 = arith.constant 0 : i32
    %12 = arith.cmpi ne, %11, %c0_i32_4 : i32
    scf.if %12 {
      %c0_i32_44 = arith.constant 0 : i32
      %c0_i32_45 = arith.constant 0 : i32
      %c0_i32_46 = arith.constant 0 : i32
      %c0_i32_47 = arith.constant 0 : i32
      %75 = tpu.memref_slice %arg2[%arg0, %c0_i32_46, %c0_i32_47] : memref<2x18x128xf32, #tpu.memory_space<any>> -> memref<1x18x128xf32, #tpu.memory_space<any>>
      %76 = tpu.memref_squeeze %75 : memref<1x18x128xf32, #tpu.memory_space<any>> -> memref<18x128xf32, #tpu.memory_space<any>>
      %c0_i32_48 = arith.constant 0 : i32
      %c0_i32_49 = arith.constant 0 : i32
      %77 = tpu.memref_slice %arg8[%c0_i32_44, %c0_i32_48, %c0_i32_49] : memref<2x18x128xf32, #tpu.memory_space<vmem>> -> memref<1x18x128xf32, #tpu.memory_space<vmem>>
      %78 = tpu.memref_squeeze %77 : memref<1x18x128xf32, #tpu.memory_space<vmem>> -> memref<18x128xf32, #tpu.memory_space<vmem>>
      %79 = tpu.memref_slice %arg10[%c0_i32_45] : memref<2x!tpu.dma_semaphore, #tpu.memory_space<semaphore_mem>> -> memref<1x!tpu.dma_semaphore, #tpu.memory_space<semaphore_mem>>
      %80 = tpu.memref_squeeze %79 : memref<1x!tpu.dma_semaphore, #tpu.memory_space<semaphore_mem>> -> memref<!tpu.dma_semaphore, #tpu.memory_space<semaphore_mem>>
      tpu.enqueue_dma source(%76 : memref<18x128xf32, #tpu.memory_space<any>>) target(%78 : memref<18x128xf32, #tpu.memory_space<vmem>>) target_semaphore(%80 : memref<!tpu.dma_semaphore, #tpu.memory_space<semaphore_mem>>)
    } else {
    }
    %c16_i32 = arith.constant 16 : i32
    %13 = arith.muli %arg1, %c16_i32 : i32
    %c0_i32_5 = arith.constant 0 : i32
    %14 = tpu.memref_slice %arg2[%arg0, %13, %c0_i32_5] : memref<2x18x128xf32, #tpu.memory_space<any>> -> memref<1x18x128xf32, #tpu.memory_space<any>>
    %15 = tpu.memref_squeeze %14 : memref<1x18x128xf32, #tpu.memory_space<any>> -> memref<18x128xf32, #tpu.memory_space<any>>
    %c0_i32_6 = arith.constant 0 : i32
    %c0_i32_7 = arith.constant 0 : i32
    %16 = tpu.memref_slice %arg8[%9, %c0_i32_6, %c0_i32_7] : memref<2x18x128xf32, #tpu.memory_space<vmem>> -> memref<1x18x128xf32, #tpu.memory_space<vmem>>
    %17 = tpu.memref_squeeze %16 : memref<1x18x128xf32, #tpu.memory_space<vmem>> -> memref<18x128xf32, #tpu.memory_space<vmem>>
    %18 = tpu.memref_slice %arg10[%9] : memref<2x!tpu.dma_semaphore, #tpu.memory_space<semaphore_mem>> -> memref<1x!tpu.dma_semaphore, #tpu.memory_space<semaphore_mem>>
    %19 = tpu.memref_squeeze %18 : memref<1x!tpu.dma_semaphore, #tpu.memory_space<semaphore_mem>> -> memref<!tpu.dma_semaphore, #tpu.memory_space<semaphore_mem>>
    tpu.wait_dma2 semaphore(%19 : memref<!tpu.dma_semaphore, #tpu.memory_space<semaphore_mem>>) src(%15 : memref<18x128xf32, #tpu.memory_space<any>>) dst(%17 : memref<18x128xf32, #tpu.memory_space<vmem>>)
    %20 = arith.index_cast %9 : i32 to index
    %c0 = arith.constant 0 : index
    %c0_8 = arith.constant 0 : index
    %21 = vector.load %arg8[%20, %c0, %c0_8] : memref<2x18x128xf32, #tpu.memory_space<vmem>>, vector<1x18x128xf32>
    %22 = vector.shape_cast %21 : vector<1x18x128xf32> to vector<18x128xf32>
    %23 = arith.truncf %22 : vector<18x128xf32> to vector<18x128xbf16>
    %c0_9 = arith.constant 0 : index
    %c0_10 = arith.constant 0 : index
    %24 = vector.load %arg3[%c0_9, %c0_10] : memref<128x64xbf16, #tpu.memory_space<vmem>>, vector<128x64xbf16>
    %cst = arith.constant dense<0.000000e+00> : vector<18x64xf32>
    %25 = tpu.matmul %23, %24, %cst {dimension_numbers = #tpu.dot_dimension_numbers<[1], [0], [0], [1], [0, 0, 1, 1], [], []>} : vector<18x128xbf16>, vector<128x64xbf16>, vector<18x64xf32> -> vector<18x64xf32>
    %c0_11 = arith.constant 0 : index
    %c0_12 = arith.constant 0 : index
    %26 = vector.load %arg4[%c0_11, %c0_12] : memref<1x64xf32, #tpu.memory_space<vmem>>, vector<1x64xf32>
    %27 = vector.broadcast %26 : vector<1x64xf32> to vector<18x64xf32>
    %28 = arith.addf %25, %27 : vector<18x64xf32>
    %cst_13 = arith.constant 0.000000e+00 : f32
    %29 = vector.broadcast %cst_13 : f32 to vector<18x64xf32>
    %30 = arith.subf %29, %28 : vector<18x64xf32>
    %31 = math.exp %30 : vector<18x64xf32>
    %cst_14 = arith.constant 1.000000e+00 : f32
    %32 = vector.broadcast %cst_14 : f32 to vector<18x64xf32>
    %33 = arith.addf %32, %31 : vector<18x64xf32>
    %34 = tpu.reciprocal %33 {approx = true} : vector<18x64xf32> -> vector<18x64xf32>
    %35 = arith.mulf %28, %34 : vector<18x64xf32>
    %c0_15 = arith.constant 0 : index
    %c0_16 = arith.constant 0 : index
    %36 = vector.load %arg9[%c0_15, %c0_16] : memref<18x64xf32, #tpu.memory_space<vmem>>, vector<18x64xf32>
    tpu.vector_store %arg9[%c0_15, %c0_16], %35 {strides = array<i32>} : memref<18x64xf32, #tpu.memory_space<vmem>>, vector<18x64xf32>,
    %c0_i32_17 = arith.constant 0 : i32
    %37 = arith.cmpi eq, %arg1, %c0_i32_17 : i32
    %38 = arith.extui %37 : i1 to i32
    %c0_i32_18 = arith.constant 0 : i32
    %39 = arith.cmpi ne, %38, %c0_i32_18 : i32
    scf.if %39 {
      %cst_44 = arith.constant 0.000000e+00 : f32
      %75 = vector.broadcast %cst_44 : f32 to vector<1x64xf32>
      %c0_45 = arith.constant 0 : index
      %c0_46 = arith.constant 0 : index
      %76 = vector.load %arg9[%c0_45, %c0_46] : memref<18x64xf32, #tpu.memory_space<vmem>>, vector<1x64xf32>
      tpu.vector_store %arg9[%c0_45, %c0_46], %75 {strides = array<i32>} : memref<18x64xf32, #tpu.memory_space<vmem>>, vector<1x64xf32>,
    } else {
    }
    %c0_i32_19 = arith.constant 0 : i32
    %40 = arith.cmpi eq, %arg1, %c0_i32_19 : i32
    %41 = arith.extui %40 : i1 to i32
    %c0_i32_20 = arith.constant 0 : i32
    %42 = arith.cmpi ne, %41, %c0_i32_20 : i32
    scf.if %42 {
      %cst_44 = arith.constant 0.000000e+00 : f32
      %75 = vector.broadcast %cst_44 : f32 to vector<1x64xf32>
      %c17 = arith.constant 17 : index
      %c0_45 = arith.constant 0 : index
      %76 = vector.load %arg9[%c17, %c0_45] : memref<18x64xf32, #tpu.memory_space<vmem>>, vector<1x64xf32>
      tpu.vector_store %arg9[%c17, %c0_45], %75 {strides = array<i32>} : memref<18x64xf32, #tpu.memory_space<vmem>>, vector<1x64xf32>,
    } else {
    }
    %c0_21 = arith.constant 0 : index
    %c0_22 = arith.constant 0 : index
    %43 = vector.load %arg9[%c0_21, %c0_22] : memref<18x64xf32, #tpu.memory_space<vmem>>, vector<16x64xf32>
    %44 = arith.truncf %43 : vector<16x64xf32> to vector<16x64xbf16>
    %c0_23 = arith.constant 0 : index
    %c0_24 = arith.constant 0 : index
    %c0_25 = arith.constant 0 : index
    %45 = vector.load %arg5[%c0_23, %c0_24, %c0_25] : memref<3x64x128xbf16, #tpu.memory_space<vmem>>, vector<1x64x128xbf16>
    %46 = vector.shape_cast %45 : vector<1x64x128xbf16> to vector<64x128xbf16>
    %cst_26 = arith.constant dense<0.000000e+00> : vector<16x128xf32>
    %47 = tpu.matmul %44, %46, %cst_26 {dimension_numbers = #tpu.dot_dimension_numbers<[1], [0], [0], [1], [0, 0, 1, 1], [], []>} : vector<16x64xbf16>, vector<64x128xbf16>, vector<16x128xf32> -> vector<16x128xf32>
    %c1 = arith.constant 1 : index
    %c0_27 = arith.constant 0 : index
    %48 = vector.load %arg9[%c1, %c0_27] : memref<18x64xf32, #tpu.memory_space<vmem>>, vector<16x64xf32>
    %49 = arith.truncf %48 : vector<16x64xf32> to vector<16x64xbf16>
    %c1_28 = arith.constant 1 : index
    %c0_29 = arith.constant 0 : index
    %c0_30 = arith.constant 0 : index
    %50 = vector.load %arg5[%c1_28, %c0_29, %c0_30] : memref<3x64x128xbf16, #tpu.memory_space<vmem>>, vector<1x64x128xbf16>
    %51 = vector.shape_cast %50 : vector<1x64x128xbf16> to vector<64x128xbf16>
    %cst_31 = arith.constant dense<0.000000e+00> : vector<16x128xf32>
    %52 = tpu.matmul %49, %51, %cst_31 {dimension_numbers = #tpu.dot_dimension_numbers<[1], [0], [0], [1], [0, 0, 1, 1], [], []>} : vector<16x64xbf16>, vector<64x128xbf16>, vector<16x128xf32> -> vector<16x128xf32>
    %53 = arith.addf %47, %52 : vector<16x128xf32>
    %c2 = arith.constant 2 : index
    %c0_32 = arith.constant 0 : index
    %54 = vector.load %arg9[%c2, %c0_32] : memref<18x64xf32, #tpu.memory_space<vmem>>, vector<16x64xf32>
    %55 = arith.truncf %54 : vector<16x64xf32> to vector<16x64xbf16>
    %c2_33 = arith.constant 2 : index
    %c0_34 = arith.constant 0 : index
    %c0_35 = arith.constant 0 : index
    %56 = vector.load %arg5[%c2_33, %c0_34, %c0_35] : memref<3x64x128xbf16, #tpu.memory_space<vmem>>, vector<1x64x128xbf16>
    %57 = vector.shape_cast %56 : vector<1x64x128xbf16> to vector<64x128xbf16>
    %cst_36 = arith.constant dense<0.000000e+00> : vector<16x128xf32>
    %58 = tpu.matmul %55, %57, %cst_36 {dimension_numbers = #tpu.dot_dimension_numbers<[1], [0], [0], [1], [0, 0, 1, 1], [], []>} : vector<16x64xbf16>, vector<64x128xbf16>, vector<16x128xf32> -> vector<16x128xf32>
    %59 = arith.addf %53, %58 : vector<16x128xf32>
    %c0_37 = arith.constant 0 : index
    %c0_38 = arith.constant 0 : index
    %60 = vector.load %arg6[%c0_37, %c0_38] : memref<1x128xf32, #tpu.memory_space<vmem>>, vector<1x128xf32>
    %61 = vector.broadcast %60 : vector<1x128xf32> to vector<16x128xf32>
    %62 = arith.addf %59, %61 : vector<16x128xf32>
    %cst_39 = arith.constant 0.000000e+00 : f32
    %63 = vector.broadcast %cst_39 : f32 to vector<16x128xf32>
    %64 = arith.subf %63, %62 : vector<16x128xf32>
    %65 = math.exp %64 : vector<16x128xf32>
    %cst_40 = arith.constant 1.000000e+00 : f32
    %66 = vector.broadcast %cst_40 : f32 to vector<16x128xf32>
    %67 = arith.addf %66, %65 : vector<16x128xf32>
    %68 = tpu.reciprocal %67 {approx = true} : vector<16x128xf32> -> vector<16x128xf32>
    %69 = arith.mulf %62, %68 : vector<16x128xf32>
    %70 = vector.extract_strided_slice %22 {offsets = [1, 0], sizes = [16, 128], strides = [1, 1]} : vector<18x128xf32> to vector<16x128xf32>
    %71 = arith.addf %69, %70 : vector<16x128xf32>
    %c0_41 = arith.constant 0 : index
    %c0_42 = arith.constant 0 : index
    %c0_43 = arith.constant 0 : index
    %72 = vector.load %arg7[%c0_41, %c0_42, %c0_43] : memref<1x16x128xf32, #tpu.memory_space<vmem>>, vector<1x16x128xf32>
    %73 = vector.shape_cast %72 : vector<1x16x128xf32> to vector<16x128xf32>
    %74 = vector.shape_cast %71 : vector<16x128xf32> to vector<1x16x128xf32>
    tpu.vector_store %arg7[%c0_41, %c0_42, %c0_43], %74 {strides = array<i32>} : memref<1x16x128xf32, #tpu.memory_space<vmem>>, vector<1x16x128xf32>,
    return
  }
  func.func @transform_1(%arg0: i32, %arg1: i32) -> (i32, i32) {
    %c0_i32 = arith.constant 0 : i32
    %c0_i32_0 = arith.constant 0 : i32
    %c0_i32_1 = arith.constant 0 : i32
    return %c0_i32, %c0_i32_0 : i32, i32
  }
  func.func @transform_2(%arg0: i32, %arg1: i32) -> (i32, i32) {
    %c0_i32 = arith.constant 0 : i32
    %c0_i32_0 = arith.constant 0 : i32
    %c0_i32_1 = arith.constant 0 : i32
    return %c0_i32, %c0_i32_0 : i32, i32
  }
  func.func @transform_3(%arg0: i32, %arg1: i32) -> (i32, i32, i32) {
    %c0_i32 = arith.constant 0 : i32
    %c0_i32_0 = arith.constant 0 : i32
    %c0_i32_1 = arith.constant 0 : i32
    %c0_i32_2 = arith.constant 0 : i32
    return %c0_i32, %c0_i32_0, %c0_i32_1 : i32, i32, i32
  }
  func.func @transform_4(%arg0: i32, %arg1: i32) -> (i32, i32) {
    %c0_i32 = arith.constant 0 : i32
    %c0_i32_0 = arith.constant 0 : i32
    %c0_i32_1 = arith.constant 0 : i32
    return %c0_i32, %c0_i32_0 : i32, i32
  }
  func.func @transform_5(%arg0: i32, %arg1: i32) -> (i32, i32, i32) {
    %c0_i32 = arith.constant 0 : i32
    %c0_i32_0 = arith.constant 0 : i32
    return %arg0, %arg1, %c0_i32 : i32, i32, i32
  }
}

</mosaic_0001>

<llo_original>
// kernel: tpu_custom_call.1
$region0: #{tpu_custom_call.1}
  #allocation0 [shape = 'u32[]', space=smem, size = 0x4, offset = 0x4, fixed_abs, tag = 'smem constant byte address 0x4 - core index']
  #allocation1 [shape = 'u32[144,128]{1,0:T(1,128)}', space=vmem, size = 0x12000, scoped, tag = 'internal scratch']
  #allocation2 [shape = 'f32[2,18,128]{2,1,0:T(8,128)}', space=vmem, size = 0x6000, scoped, tag = 'scratch operand']
  #allocation3 [shape = 'f32[18,64]{1,0:T(8,128)}', space=vmem, size = 0x3000, scoped, tag = 'scratch operand']
  #allocation4 [shape = 's32[2]{0}', space=sflag, size = 0x8, scoped, tag = 'scratch operand']
  #allocation7 [shape = 's32[]', space=sflag, size = 0x4, offset = 0, fixed_abs, tag = 'sflag constant byte address 0x0 - dummy sync flag']
  %s0 = inlined_call_operand.vmem [shape: f32[2,18,128], index: 0, kind: input, shape index: {}]
  %s1 = inlined_call_operand.vmem [shape: bf16[128,64], index: 1, kind: input, shape index: {}]
  %s2 = inlined_call_operand.vmem [shape: f32[1,64], index: 2, kind: input, shape index: {}]
  %s3 = inlined_call_operand.vmem [shape: bf16[3,64,128], index: 3, kind: input, shape index: {}]
  %s4 = inlined_call_operand.vmem [shape: f32[1,128], index: 4, kind: input, shape index: {}]
  %s5 = inlined_call_operand.hbm [shape: f32[2,16,128], index: 5, kind: output, shape index: {}]
  %s6 = sld [smem:[#allocation0]]
  $region94: #{tpu_custom_call.1} parent=0
    _
  %s8 = ssub.s32 1, %s6
  %s9 = scalar_select 0, %s8, %s6
  $region1: #{tpu_custom_call.1} parent=0
    #allocation5 [shape = 'u8[16384]{0}', space=vmem, size = 0x4000, scoped, tag = 'output window, operand 0']
    #allocation6 [shape = 's32[2]{0}', space=sflag, size = 0x8, scoped, tag = 'scoped memory for tpu_custom_call.1']
    %10 = vsyncpa [#allocation6], 0
    %s11 = scalar_lea.sflag [#allocation6], 1
    %12 = vsyncpa %s11, 0
    loop: start=0, step=1, limit=4
    $region2: #{tpu_custom_call.1} parent=1 // loop_pre_header
      _
    $region3: #{tpu_custom_call.1} parent=1 // loop_header
      %s14 = sphi 0, %s18
      %p15 = scmp.ge.s32.totalorder %s14, 4
      %s21 = sphi 0, %s33
      %s22 = sphi 0, %s29
      %s23 = sphi 0, %s21
      %s24 = sphi 0, %s22
      %s25 = sphi 0, %s23
      %s26 = sphi 0, %s24
      %s34 = sphi 0, %s34
      %s36 = sphi 0, %s34
      %s37 = sphi 0, %s36
      %s51 = sphi 0, %s37
      %s55 = sphi 0, %s55
      %s57 = sphi 0, %s55
      %s58 = sphi 0, %s57
      %s72 = sphi 0, %s58
      %s76 = sphi 0, %s76
      %s78 = sphi 0, %s76
      %s79 = sphi 0, %s78
      %s93 = sphi 0, %s79
      %s97 = sphi 0, %s97
      %s99 = sphi 0, %s97
      %s100 = sphi 0, %s99
      %s114 = sphi 0, %s100
      %s122 = sphi 0, %s124
      %s125 = sphi 0, %s122
      %s126 = sphi 0, %s125
      %s142 = sphi 0, %s126
    $region4: #{tpu_custom_call.1} parent=1 // loop_header_branch
      %17 = sbr.rel (%p15) target = $region8
    $region5: #{tpu_custom_call.1} parent=1 // loop_body
      %s19 = ssub.s32 %s14, 1
      %s20 = ssub.s32 %s14, 2
      %s27 = sadd.s32 1, %s22
      %p28 = scmp.ge.s32.totalorder %s27, 1
      %s29 = scalar_select %p28, 0, %s27
      %s30 = sadd.s32 1, %s21
      %s31 = scalar_select %p28, %s30, %s21
      %p32 = scmp.ge.s32.totalorder %s31, 2
      %s33 = scalar_select %p32, 0, %s31
      %s35 = sadd.s32 %s34, 1
      %p38 = scmp.eq.s32.totalorder %s14, 1
      %p39 = scmp.ne.s32.totalorder %s34, %s36
      %p40 = scmp.eq.s32.totalorder %s14, 0
      %p41 = por %p39, %p40
      %p42 = scmp.ne.s32.totalorder %s34, %s36
      %p43 = scmp.eq.s32.totalorder %s19, 1
      %p44 = por %p42, %p43
      %p45 = scmp.ne.s32.totalorder %s36, %s37
      %p46 = scmp.eq.s32.totalorder %s19, 0
      %p47 = por %p45, %p46
      %p48 = scmp.ne.s32.totalorder %s36, %s37
      %p49 = scmp.eq.s32.totalorder %s20, 1
      %p50 = por %p48, %p49
      %p52 = scmp.ne.s32.totalorder %s37, %s51
      %p53 = scmp.eq.s32.totalorder %s20, 0
      %p54 = por %p52, %p53
      %s56 = sadd.s32 %s55, 1
      %p59 = scmp.eq.s32.totalorder %s14, 1
      %p60 = scmp.ne.s32.totalorder %s55, %s57
      %p61 = scmp.eq.s32.totalorder %s14, 0
      %p62 = por %p60, %p61
      %p63 = scmp.ne.s32.totalorder %s55, %s57
      %p64 = scmp.eq.s32.totalorder %s19, 1
      %p65 = por %p63, %p64
      %p66 = scmp.ne.s32.totalorder %s57, %s58
      %p67 = scmp.eq.s32.totalorder %s19, 0
      %p68 = por %p66, %p67
      %p69 = scmp.ne.s32.totalorder %s57, %s58
      %p70 = scmp.eq.s32.totalorder %s20, 1
      %p71 = por %p69, %p70
      %p73 = scmp.ne.s32.totalorder %s58, %s72
      %p74 = scmp.eq.s32.totalorder %s20, 0
      %p75 = por %p73, %p74
      %s77 = sadd.s32 %s76, 1
      %p80 = scmp.eq.s32.totalorder %s14, 1
      %p81 = scmp.ne.s32.totalorder %s76, %s78
      %p82 = scmp.eq.s32.totalorder %s14, 0
      %p83 = por %p81, %p82
      %p84 = scmp.ne.s32.totalorder %s76, %s78
      %p85 = scmp.eq.s32.totalorder %s19, 1
      %p86 = por %p84, %p85
      %p87 = scmp.ne.s32.totalorder %s78, %s79
      %p88 = scmp.eq.s32.totalorder %s19, 0
      %p89 = por %p87, %p88
      %p90 = scmp.ne.s32.totalorder %s78, %s79
      %p91 = scmp.eq.s32.totalorder %s20, 1
      %p92 = por %p90, %p91
      %p94 = scmp.ne.s32.totalorder %s79, %s93
      %p95 = scmp.eq.s32.totalorder %s20, 0
      %p96 = por %p94, %p95
      %s98 = sadd.s32 %s97, 1
      %p101 = scmp.eq.s32.totalorder %s14, 1
      %p102 = scmp.ne.s32.totalorder %s97, %s99
      %p103 = scmp.eq.s32.totalorder %s14, 0
      %p104 = por %p102, %p103
      %p105 = scmp.ne.s32.totalorder %s97, %s99
      %p106 = scmp.eq.s32.totalorder %s19, 1
      %p107 = por %p105, %p106
      %p108 = scmp.ne.s32.totalorder %s99, %s100
      %p109 = scmp.eq.s32.totalorder %s19, 0
      %p110 = por %p108, %p109
      %p111 = scmp.ne.s32.totalorder %s99, %s100
      %p112 = scmp.eq.s32.totalorder %s20, 1
      %p113 = por %p111, %p112
      %p115 = scmp.ne.s32.totalorder %s100, %s114
      %p116 = scmp.eq.s32.totalorder %s20, 0
      %p117 = por %p115, %p116
      %s118 = ssub.s32 %s21, %s33
      %s119 = ssub.s32 %s22, %s29
      %s120 = sor.u32 %s118, %s119
      %p121 = scmp.eq.s32.totalorder %s120, 0
      %s123 = sadd.s32 %s122, 1
      %s124 = scalar_select %p121, %s122, %s123
      %p127 = pneg %p121
      %p128 = scmp.eq.s32.totalorder %s14, 1
      %p129 = por %p127, %p128
      %p130 = scmp.ne.s32.totalorder %s122, %s125
      %p131 = scmp.eq.s32.totalorder %s14, 0
      %p132 = por %p130, %p131
      %p133 = scmp.ne.s32.totalorder %s122, %s125
      %p134 = scmp.eq.s32.totalorder %s19, 1
      %p135 = por %p133, %p134
      %p136 = scmp.ne.s32.totalorder %s125, %s126
      %p137 = scmp.eq.s32.totalorder %s19, 0
      %p138 = por %p136, %p137
      %p139 = scmp.ne.s32.totalorder %s125, %s126
      %p140 = scmp.eq.s32.totalorder %s20, 1
      %p141 = por %p139, %p140
      %p143 = scmp.ne.s32.totalorder %s126, %s142
      %p144 = scmp.eq.s32.totalorder %s20, 0
      %p145 = por %p143, %p144
      %p146 = scmp.le.s32.totalorder 1, %s14
      %p147 = scmp.lt.s32.totalorder %s14, 3
      %p148 = pnand %p146, %p147
      %p149 = pneg %p148
      // Predicated region
      $region9: #{tpu_custom_call.1} parent=5 // pred_check
        _
      $region10: #{tpu_custom_call.1} parent=5 // pred_check_branch
        %151 = sbr.rel (%p148) target = $region12
      $region11: #{tpu_custom_call.1} parent=5 // pred_region
        %s152 = ssub.s32 %s14, 1
        // Predicated region
        $region13: #{tpu_custom_call.1} parent=11 // pred_check
          %p153 = pneg %p47
        $region14: #{tpu_custom_call.1} parent=11 // pred_check_branch
          %155 = sbr.rel (%p153) target = $region16
        $region15: #{tpu_custom_call.1} parent=11 // pred_region
          _
        $region16: #{tpu_custom_call.1} parent=11 // pred_fallthru
          _
        // Predicated region
        $region17: #{tpu_custom_call.1} parent=11 // pred_check
          %p156 = pneg %p68
        $region18: #{tpu_custom_call.1} parent=11 // pred_check_branch
          %158 = sbr.rel (%p156) target = $region20
        $region19: #{tpu_custom_call.1} parent=11 // pred_region
          _
        $region20: #{tpu_custom_call.1} parent=11 // pred_fallthru
          _
        // Predicated region
        $region21: #{tpu_custom_call.1} parent=11 // pred_check
          %p159 = pneg %p89
        $region22: #{tpu_custom_call.1} parent=11 // pred_check_branch
          %161 = sbr.rel (%p159) target = $region24
        $region23: #{tpu_custom_call.1} parent=11 // pred_region
          _
        $region24: #{tpu_custom_call.1} parent=11 // pred_fallthru
          _
        // Predicated region
        $region25: #{tpu_custom_call.1} parent=11 // pred_check
          %p162 = pneg %p110
        $region26: #{tpu_custom_call.1} parent=11 // pred_check_branch
          %164 = sbr.rel (%p162) target = $region28
        $region27: #{tpu_custom_call.1} parent=11 // pred_region
          _
        $region28: #{tpu_custom_call.1} parent=11 // pred_fallthru
          _
      $region12: #{tpu_custom_call.1} parent=5 // pred_fallthru
        _
      %p165 = scmp.lt.s32.totalorder %s14, 2
      // Predicated region
      $region29: #{tpu_custom_call.1} parent=5 // pred_check
        %p166 = pneg %p165
      $region30: #{tpu_custom_call.1} parent=5 // pred_check_branch
        %168 = sbr.rel (%p166) target = $region32
      $region31: #{tpu_custom_call.1} parent=5 // pred_region
        _
      $region32: #{tpu_custom_call.1} parent=5 // pred_fallthru
        _
      %p169 = scmp.le.s32.totalorder 1, %s14
      %p170 = scmp.lt.s32.totalorder %s14, 3
      %p171 = pnand %p169, %p170
      %p172 = pneg %p171
      // Predicated region
      $region33: #{tpu_custom_call.1} parent=5 // pred_check
        _
      $region34: #{tpu_custom_call.1} parent=5 // pred_check_branch
        %174 = sbr.rel (%p171) target = $region36
      $region35: #{tpu_custom_call.1} parent=5 // pred_region
        %s175 = ssub.s32 %s14, 1
        %p176 = pneg %p47
        %p177 = pneg %p44
        %p178 = pneg %p68
        %p179 = pneg %p65
        %p180 = pneg %p89
        %p181 = pneg %p86
        %p182 = pneg %p110
        %p183 = pneg %p107
        %p184 = pneg %p138
        %p185 = pneg %p135
        %s186 = sand.u32 %s125, 1
        %s187 = scalar_lea.sflag [#allocation6], %s186
        %s188 = sand.u32 %s125, 1
        %s189 = smul.addr %s188, 16
        %s190 = scalar_lea.vmem [#allocation5], %s189
        %s191 = smul.u32 2, %s24
        %p193 = scmp.lt.s32.totalorder %s24, 0
        %s194 = ssub.s32 0, %s24
        %s195 = scalar_select %p193, %s194, %s24
        %s196 = sand.u32 %s195, 1
        %s197 = ssub.s32 0, %s196
        %s198 = scalar_select %p193, %s197, %s196
        %p199 = scmp.ne.s32.totalorder %s198, 0
        %p200 = scmp.lt.s32.totalorder %s198, 0
        %p201 = pnand %p200, %p199
        %p202 = pneg %p201
        %s203 = sadd.s32 %s198, 2
        %s204 = scalar_select %p202, %s203, %s198
        %p205 = scmp.eq.s32.totalorder %s24, 0
        // Predicated region
        $region37: #{tpu_custom_call.1} parent=35 // pred_check
          %p206 = pneg %p205
        $region38: #{tpu_custom_call.1} parent=35 // pred_check_branch
          %208 = sbr.rel (%p206) target = $region40
        $region39: #{tpu_custom_call.1} parent=35 // pred_region
          %s209 = smul.u32 %s23, 24
          %s210 = scalar_lea.vmem %s0, %s209
          %p212 = scmp.lt.u32.totalorder 18, 8
          %p213 = pneg %p212
          // Predicated region
          $region41: #{tpu_custom_call.1} parent=39 // pred_check
            _
          $region42: #{tpu_custom_call.1} parent=39 // pred_check_branch
            %215 = sbr.rel (%p212) target = $region44
          $region43: #{tpu_custom_call.1} parent=39 // pred_region
            %s231 = sand.u32 18, 7
            %p232 = scmp.eq.s32.totalorder %s231, 0
            %p233 = pneg %p232
            // Predicated region
            $region56: #{tpu_custom_call.1} parent=43 // pred_check
              _
            $region57: #{tpu_custom_call.1} parent=43 // pred_check_branch
              %235 = sbr.rel (%p232) target = $region59
            $region58: #{tpu_custom_call.1} parent=43 // pred_region
              %s236 = sand.u32 18, 7
              %s237 = ssub.s32 18, %s236
              %s238 = scalar_lea.vmem %s210, %s237
              %s239 = ssub.s32 18, %s236
              %s240 = scalar_lea.vmem [#allocation2], %s239
              loop: start=0, step=1, limit=1
              $region60: #{tpu_custom_call.1} parent=58 // loop_pre_header
                _
              $region61: #{tpu_custom_call.1} parent=58 // loop_header
                %s242 = sphi 0, %s246
                %p243 = scmp.ge.s32.totalorder %s242, 1
                %s247 = sphi %s210, %s210
                %s248 = sphi [#allocation2], [#allocation2]
              $region62: #{tpu_custom_call.1} parent=58 // loop_header_branch
                %245 = sbr.rel (%p243) target = $region66
              $region63: #{tpu_custom_call.1} parent=58 // loop_body
                %v249 = vld [vmem:[%s247] sm:$0xff]
                %250 = vst [vmem:[%s248] sm:$0xff] %v249
                %v251 = vld [vmem:[%s247 + $0x8] sm:$0xff]
                %252 = vst [vmem:[%s248 + $0x8] sm:$0xff] %v251
              $region64: #{tpu_custom_call.1} parent=58 // loop_footer
                %s246 = sadd.s32 1, %s242
              $region65: #{tpu_custom_call.1} parent=58 // loop_footer_branch
                %241 = sbr.rel target = $region61
              $region66: #{tpu_custom_call.1} parent=58 // loop_exit
                _
              %s253 = sshll.u32 1, %s236
              %s254 = ssub.s32 %s253, 1
              loop: start=0, step=1, limit=1
              $region67: #{tpu_custom_call.1} parent=58 // loop_pre_header
                _
              $region68: #{tpu_custom_call.1} parent=58 // loop_header
                %s256 = sphi 0, %s260
                %p257 = scmp.ge.s32.totalorder %s256, 1
                %s261 = sphi %s238, %s238
                %s262 = sphi %s240, %s240
              $region69: #{tpu_custom_call.1} parent=58 // loop_header_branch
                %259 = sbr.rel (%p257) target = $region73
              $region70: #{tpu_custom_call.1} parent=58 // loop_body
                %v263 = vld [vmem:[%s261] sm:%s254]
                %264 = vst [vmem:[%s262] sm:%s254] %v263
              $region71: #{tpu_custom_call.1} parent=58 // loop_footer
                %s260 = sadd.s32 1, %s256
              $region72: #{tpu_custom_call.1} parent=58 // loop_footer_branch
                %255 = sbr.rel target = $region68
              $region73: #{tpu_custom_call.1} parent=58 // loop_exit
                _
            $region59: #{tpu_custom_call.1} parent=43 // pred_fallthru
              _
          $region44: #{tpu_custom_call.1} parent=39 // pred_fallthru
            _
          // Predicated region
          $region45: #{tpu_custom_call.1} parent=39 // pred_check
            %p216 = pneg %p212
          $region46: #{tpu_custom_call.1} parent=39 // pred_check_branch
            %218 = sbr.rel (%p216) target = $region48
          $region47: #{tpu_custom_call.1} parent=39 // pred_region
            %s219 = sshll.u32 1, 18
            %s220 = ssub.s32 %s219, 1
            loop: start=0, step=1, limit=1
            $region49: #{tpu_custom_call.1} parent=47 // loop_pre_header
              _
            $region50: #{tpu_custom_call.1} parent=47 // loop_header
              %s222 = sphi 0, %s226
              %p223 = scmp.ge.s32.totalorder %s222, 1
              %s227 = sphi %s210, %s210
              %s228 = sphi [#allocation2], [#allocation2]
            $region51: #{tpu_custom_call.1} parent=47 // loop_header_branch
              %225 = sbr.rel (%p223) target = $region55
            $region52: #{tpu_custom_call.1} parent=47 // loop_body
              %v229 = vld [vmem:[%s227] sm:%s220]
              %230 = vst [vmem:[%s228] sm:%s220] %v229
            $region53: #{tpu_custom_call.1} parent=47 // loop_footer
              %s226 = sadd.s32 1, %s222
            $region54: #{tpu_custom_call.1} parent=47 // loop_footer_branch
              %221 = sbr.rel target = $region50
            $region55: #{tpu_custom_call.1} parent=47 // loop_exit
              _
          $region48: #{tpu_custom_call.1} parent=39 // pred_fallthru
            _
          // Predicated region
          $region74: #{tpu_custom_call.1} parent=39 // pred_check
            _
          $region75: #{tpu_custom_call.1} parent=39 // pred_check_branch
            %267 = sbr.rel (0) target = $region77
          $region76: #{tpu_custom_call.1} parent=39 // pred_region
            %268 = vsyncadd [#allocation4], 288
          $region77: #{tpu_custom_call.1} parent=39 // pred_fallthru
            _
        $region40: #{tpu_custom_call.1} parent=35 // pred_fallthru
          _
        %s269 = smul.u32 %s204, 24
        %s270 = scalar_lea.vmem [#allocation2], %s269
        %s271 = scalar_lea.sflag [#allocation4], %s204
        %s272 = smul.u32 18, 1
        %s273 = sshll.u32 %s272, 4
        %274 = dma.done %s271, %s273
        %v275 = vld [vmem:[%s270] sm:$0xff]
        %v276 = vld [vmem:[%s270 + $0x8] sm:$0xff]
        %v277 = vld [vmem:[%s270 + $0x10] sm:$0x3]
        %v278 = vpack.c.bf16 %v276, %v275
        %v279 = vpack.c.bf16 %v277, %v277
        %v280 = vld [vmem:[%s1] sm:$0xf]
        %v281 = vld [vmem:[%s1 + $0x4] sm:$0xf]
        %v282 = vld [vmem:[%s1 + $0x8] sm:$0xf]
        %v283 = vld [vmem:[%s1 + $0xc] sm:$0xf]
        %v284 = vld [vmem:[%s1 + $0x10] sm:$0xf]
        %v285 = vld [vmem:[%s1 + $0x14] sm:$0xf]
        %v286 = vld [vmem:[%s1 + $0x18] sm:$0xf]
        %v287 = vld [vmem:[%s1 + $0x1c] sm:$0xf]
        %v288 = vld [vmem:[%s1 + $0x20] sm:$0xf]
        %v289 = vld [vmem:[%s1 + $0x24] sm:$0xf]
        %v290 = vld [vmem:[%s1 + $0x28] sm:$0xf]
        %v291 = vld [vmem:[%s1 + $0x2c] sm:$0xf]
        %v292 = vld [vmem:[%s1 + $0x30] sm:$0xf]
        %v293 = vld [vmem:[%s1 + $0x34] sm:$0xf]
        %v294 = vld [vmem:[%s1 + $0x38] sm:$0xf]
        %v295 = vld [vmem:[%s1 + $0x3c] sm:$0xf]
        %v296 = vld [vmem:[%s2] sm:$0x1]
        %v298 = vlaneseq
        %v299 = vshrl.u32 %v298, 7
        %v300 = vsub.s32 0, %v299
        %v301 = vrot.slane %v296, %v300
        %v319 = vunpack.c.l.b16 %v280
        %v320 = vunpack.c.l.b16 %v281
        %v321 = vunpack.c.l.b16 %v282
        %v322 = vunpack.c.l.b16 %v283
        %v323 = vunpack.c.l.b16 %v284
        %v324 = vunpack.c.l.b16 %v285
        %v325 = vunpack.c.l.b16 %v286
        %v326 = vunpack.c.l.b16 %v287
        %v327 = vunpack.c.l.b16 %v288
        %v328 = vunpack.c.l.b16 %v289
        %v329 = vunpack.c.l.b16 %v290
        %v330 = vunpack.c.l.b16 %v291
        %v331 = vunpack.c.l.b16 %v292
        %v332 = vunpack.c.l.b16 %v293
        %v333 = vunpack.c.l.b16 %v294
        %v334 = vunpack.c.l.b16 %v295
        %v335 = vpack.c.b16 %v320, %v319
        %v336 = vpack.c.b16 %v322, %v321
        %v337 = vpack.c.b16 %v324, %v323
        %v338 = vpack.c.b16 %v326, %v325
        %v339 = vpack.c.b16 %v328, %v327
        %v340 = vpack.c.b16 %v330, %v329
        %v341 = vpack.c.b16 %v332, %v331
        %v342 = vpack.c.b16 %v334, %v333
        %351 = vmatprep.subr.bf16.mxu0 0
        %352 = vmatpush1.bf16.msra.mxu0 %v342
        %353 = vmatprep.subr.bf16.mxu0 0
        %354 = vmatpush1.bf16.msra.mxu0 %v341
        %355 = vmatprep.subr.bf16.mxu0 0
        %356 = vmatpush1.bf16.msra.mxu0 %v340
        %357 = vmatprep.subr.bf16.mxu0 0
        %358 = vmatpush1.bf16.msra.mxu0 %v339
        %359 = vmatprep.subr.bf16.mxu0 0
        %360 = vmatpush1.bf16.msra.mxu0 %v338
        %361 = vmatprep.subr.bf16.mxu0 0
        %362 = vmatpush1.bf16.msra.mxu0 %v337
        %363 = vmatprep.subr.bf16.mxu0 0
        %364 = vmatpush1.bf16.msra.mxu0 %v336
        %365 = vmatprep.subr.bf16.mxu0 0
        %366 = vmatpush1.bf16.msra.mxu0 %v335
        %367 = vmatprep.subr.bf16.mxu0 0
        %368 = vmatpush2.bf16.msra.mxu0 0
        %369 = vmatprep.subr.bf16.mxu0 0
        %370 = vmatpush2.bf16.msra.mxu0 0
        %371 = vmatprep.subr.bf16.mxu0 0
        %372 = vmatpush2.bf16.msra.mxu0 0
        %373 = vmatprep.subr.bf16.mxu0 0
        %374 = vmatpush2.bf16.msra.mxu0 0
        %375 = vmatprep.subr.bf16.mxu0 0
        %376 = vmatpush2.bf16.msra.mxu0 0
        %377 = vmatprep.subr.bf16.mxu0 0
        %378 = vmatpush2.bf16.msra.mxu0 0
        %379 = vmatprep.subr.bf16.mxu0 0
        %380 = vmatpush2.bf16.msra.mxu0 0
        %381 = vmatprep.subr.bf16.mxu0 0
        %382 = vmatpush2.bf16.msra.mxu0 0
        %383 = vmatprep.mubr.bf16.mxu0 0
        %384 = vmatmul.mubr.bf16.gmra.mxu0 %v278
        %v385 = vpop.f32.mrf.mxu0
        %v386 = vadd.f32 %v301, %v385
        %v387 = vpop.f32.mrf.mxu0
        %v388 = vpop.f32.mrf.mxu0
        %v389 = vadd.f32 %v301, %v388
        %v390 = vpop.f32.mrf.mxu0
        %391 = vmatprep.mubr.bf16.mxu0 0
        %392 = vmatmul.mubr.bf16.gmra.mxu0 %v279
        %v393 = vpop.f32.mrf.mxu0
        %v394 = vadd.f32 %v301, %v393
        %v395 = vpop.f32.mrf.mxu0
        %v396 = vpop.f32.mrf.mxu0
        %v397 = vpop.f32.mrf.mxu0
        %398 = vdwg.mxu0
        %v399 = vsub.f32 0.0, %v386
        %v400 = vsub.f32 0.0, %v389
        %v401 = vsub.f32 0.0, %v394
        %v402 = vmul.f32 %v399, 1.442695
        %v403 = vpow.pop %v402
        %v404 = vmul.f32 %v400, 1.442695
        %v405 = vpow.pop %v404
        %v406 = vmul.f32 %v401, 1.442695
        %v407 = vpow.pop %v406
        %v408 = vadd.f32 %v403, 1.0
        %v409 = vadd.f32 %v405, 1.0
        %v410 = vadd.f32 %v407, 1.0
        %v411 = vrcp.pop %v408
        %v412 = vrcp.pop %v409
        %v413 = vrcp.pop %v410
        %v414 = vmul.f32 %v386, %v411
        %v415 = vmul.f32 %v389, %v412
        %v416 = vmul.f32 %v394, %v413
        %vm417 = vcmask 523264
        %418 = vst.msk [vmem:[#allocation3] sm:$0xff] %vm417, %v414
        %419 = vst.msk [vmem:[#allocation3 + $0x8] sm:$0xff] %vm417, %v415
        %vm420 = vcmask 517120
        %421 = vst.msk [vmem:[#allocation3 + $0x10] sm:$0x3] %vm420, %v416
        // Predicated region
        $region78: #{tpu_custom_call.1} parent=35 // pred_check
          %p422 = pneg %p205
        $region79: #{tpu_custom_call.1} parent=35 // pred_check_branch
          %424 = sbr.rel (%p422) target = $region81
        $region80: #{tpu_custom_call.1} parent=35 // pred_region
          %vm425 = vcmask 516096
          %426 = vst.msk [vmem:[#allocation3] sm:$0x1] %vm425, 0.0
          %427 = vst.msk [vmem:[#allocation3 + $0x11] sm:$0x1] %vm425, 0.0
        $region81: #{tpu_custom_call.1} parent=35 // pred_fallthru
          _
        %v428 = vld [vmem:[#allocation3] sm:$0xff]
        %v429 = vld [vmem:[#allocation3 + $0x8] sm:$0xff]
        %v430 = vpack.c.bf16 %v429, %v428
        %v431 = vld [vmem:[%s3] sm:$0xf]
        %v432 = vld [vmem:[%s3 + $0x4] sm:$0xf]
        %v433 = vld [vmem:[%s3 + $0x8] sm:$0xf]
        %v434 = vld [vmem:[%s3 + $0xc] sm:$0xf]
        %v435 = vld [vmem:[%s3 + $0x10] sm:$0xf]
        %v436 = vld [vmem:[%s3 + $0x14] sm:$0xf]
        %v437 = vld [vmem:[%s3 + $0x18] sm:$0xf]
        %v438 = vld [vmem:[%s3 + $0x1c] sm:$0xf]
        %v439 = vld [vmem:[#allocation3 + $0x1] sm:$0xff]
        %v440 = vld [vmem:[#allocation3 + $0x9] sm:$0xff]
        %v441 = vpack.c.bf16 %v440, %v439
        %s442 = scalar_lea.vmem %s3, 32
        %v443 = vld [vmem:[%s442] sm:$0xf]
        %v444 = vld [vmem:[%s442 + $0x4] sm:$0xf]
        %v445 = vld [vmem:[%s442 + $0x8] sm:$0xf]
        %v446 = vld [vmem:[%s442 + $0xc] sm:$0xf]
        %v447 = vld [vmem:[%s442 + $0x10] sm:$0xf]
        %v448 = vld [vmem:[%s442 + $0x14] sm:$0xf]
        %v449 = vld [vmem:[%s442 + $0x18] sm:$0xf]
        %v450 = vld [vmem:[%s442 + $0x1c] sm:$0xf]
        %v459 = vunpack.c.l.b16 %v443
        %v460 = vunpack.c.l.b16 %v444
        %v461 = vunpack.c.l.b16 %v445
        %v462 = vunpack.c.l.b16 %v446
        %v463 = vunpack.c.l.b16 %v447
        %v464 = vunpack.c.l.b16 %v448
        %v465 = vunpack.c.l.b16 %v449
        %v466 = vunpack.c.l.b16 %v450
        %v467 = vpack.c.b16 %v460, %v459
        %v468 = vpack.c.b16 %v462, %v461
        %v469 = vpack.c.b16 %v464, %v463
        %v470 = vpack.c.b16 %v466, %v465
        %v476 = vsel %vm417, %v441, 0
        %478 = vmatprep.subr.bf16.mxu0 0
        %479 = vmatpush1.bf16.msra.mxu0 0
        %480 = vmatprep.subr.bf16.mxu0 0
        %481 = vmatpush1.bf16.msra.mxu0 0
        %482 = vmatprep.subr.bf16.mxu0 0
        %483 = vmatpush1.bf16.msra.mxu0 0
        %484 = vmatprep.subr.bf16.mxu0 0
        %485 = vmatpush1.bf16.msra.mxu0 0
        %486 = vmatprep.subr.bf16.mxu0 0
        %487 = vmatpush1.bf16.msra.mxu0 %v470
        %488 = vmatprep.subr.bf16.mxu0 0
        %489 = vmatpush1.bf16.msra.mxu0 %v469
        %490 = vmatprep.subr.bf16.mxu0 0
        %491 = vmatpush1.bf16.msra.mxu0 %v468
        %492 = vmatprep.subr.bf16.mxu0 0
        %493 = vmatpush1.bf16.msra.mxu0 %v467
        %494 = vmatprep.subr.bf16.mxu0 0
        %495 = vmatpush2.bf16.msra.mxu0 0
        %496 = vmatprep.subr.bf16.mxu0 0
        %497 = vmatpush2.bf16.msra.mxu0 0
        %498 = vmatprep.subr.bf16.mxu0 0
        %499 = vmatpush2.bf16.msra.mxu0 0
        %500 = vmatprep.subr.bf16.mxu0 0
        %501 = vmatpush2.bf16.msra.mxu0 0
        %502 = vmatprep.subr.bf16.mxu0 0
        %503 = vmatpush2.bf16.msra.mxu0 0
        %504 = vmatprep.subr.bf16.mxu0 0
        %505 = vmatpush2.bf16.msra.mxu0 0
        %506 = vmatprep.subr.bf16.mxu0 0
        %507 = vmatpush2.bf16.msra.mxu0 0
        %508 = vmatprep.subr.bf16.mxu0 0
        %509 = vmatpush2.bf16.msra.mxu0 0
        %510 = vmatprep.mubr.bf16.mxu0 0
        %511 = vmatmul.mubr.bf16.gmra.mxu0 %v476
        %v512 = vpop.f32.mrf.mxu0
        %v513 = vadd.f32 0.0, %v512
        %v514 = vpop.f32.mrf.mxu0
        %v515 = vpop.f32.mrf.mxu0
        %v516 = vadd.f32 0.0, %v515
        %v517 = vpop.f32.mrf.mxu0
        %518 = vdwg.mxu0
        %v527 = vunpack.c.l.b16 %v431
        %v528 = vunpack.c.l.b16 %v432
        %v529 = vunpack.c.l.b16 %v433
        %v530 = vunpack.c.l.b16 %v434
        %v531 = vunpack.c.l.b16 %v435
        %v532 = vunpack.c.l.b16 %v436
        %v533 = vunpack.c.l.b16 %v437
        %v534 = vunpack.c.l.b16 %v438
        %v535 = vpack.c.b16 %v528, %v527
        %v536 = vpack.c.b16 %v530, %v529
        %v537 = vpack.c.b16 %v532, %v531
        %v538 = vpack.c.b16 %v534, %v533
        %v544 = vsel %vm417, %v430, 0
        %546 = vmatprep.subr.bf16.mxu0 0
        %547 = vmatpush1.bf16.msra.mxu0 0
        %548 = vmatprep.subr.bf16.mxu0 0
        %549 = vmatpush1.bf16.msra.mxu0 0
        %550 = vmatprep.subr.bf16.mxu0 0
        %551 = vmatpush1.bf16.msra.mxu0 0
        %552 = vmatprep.subr.bf16.mxu0 0
        %553 = vmatpush1.bf16.msra.mxu0 0
        %554 = vmatprep.subr.bf16.mxu0 0
        %555 = vmatpush1.bf16.msra.mxu0 %v538
        %556 = vmatprep.subr.bf16.mxu0 0
        %557 = vmatpush1.bf16.msra.mxu0 %v537
        %558 = vmatprep.subr.bf16.mxu0 0
        %559 = vmatpush1.bf16.msra.mxu0 %v536
        %560 = vmatprep.subr.bf16.mxu0 0
        %561 = vmatpush1.bf16.msra.mxu0 %v535
        %562 = vmatprep.subr.bf16.mxu0 0
        %563 = vmatpush2.bf16.msra.mxu0 0
        %564 = vmatprep.subr.bf16.mxu0 0
        %565 = vmatpush2.bf16.msra.mxu0 0
        %566 = vmatprep.subr.bf16.mxu0 0
        %567 = vmatpush2.bf16.msra.mxu0 0
        %568 = vmatprep.subr.bf16.mxu0 0
        %569 = vmatpush2.bf16.msra.mxu0 0
        %570 = vmatprep.subr.bf16.mxu0 0
        %571 = vmatpush2.bf16.msra.mxu0 0
        %572 = vmatprep.subr.bf16.mxu0 0
        %573 = vmatpush2.bf16.msra.mxu0 0
        %574 = vmatprep.subr.bf16.mxu0 0
        %575 = vmatpush2.bf16.msra.mxu0 0
        %576 = vmatprep.subr.bf16.mxu0 0
        %577 = vmatpush2.bf16.msra.mxu0 0
        %578 = vmatprep.mubr.bf16.mxu0 0
        %579 = vmatmul.mubr.bf16.gmra.mxu0 %v544
        %v580 = vpop.f32.mrf.mxu0
        %v581 = vadd.f32 %v513, %v580
        %v582 = vpop.f32.mrf.mxu0
        %v583 = vpop.f32.mrf.mxu0
        %v584 = vadd.f32 %v516, %v583
        %v585 = vpop.f32.mrf.mxu0
        %586 = vdwg.mxu0
        %v587 = vld [vmem:[#allocation3 + $0x2] sm:$0xff]
        %v588 = vld [vmem:[#allocation3 + $0xa] sm:$0xff]
        %v589 = vpack.c.bf16 %v588, %v587
        %s590 = scalar_lea.vmem %s3, 64
        %v591 = vld [vmem:[%s590] sm:$0xf]
        %v592 = vld [vmem:[%s590 + $0x4] sm:$0xf]
        %v593 = vld [vmem:[%s590 + $0x8] sm:$0xf]
        %v594 = vld [vmem:[%s590 + $0xc] sm:$0xf]
        %v595 = vld [vmem:[%s590 + $0x10] sm:$0xf]
        %v596 = vld [vmem:[%s590 + $0x14] sm:$0xf]
        %v597 = vld [vmem:[%s590 + $0x18] sm:$0xf]
        %v598 = vld [vmem:[%s590 + $0x1c] sm:$0xf]
        %v607 = vunpack.c.l.b16 %v591
        %v608 = vunpack.c.l.b16 %v592
        %v609 = vunpack.c.l.b16 %v593
        %v610 = vunpack.c.l.b16 %v594
        %v611 = vunpack.c.l.b16 %v595
        %v612 = vunpack.c.l.b16 %v596
        %v613 = vunpack.c.l.b16 %v597
        %v614 = vunpack.c.l.b16 %v598
        %v615 = vpack.c.b16 %v608, %v607
        %v616 = vpack.c.b16 %v610, %v609
        %v617 = vpack.c.b16 %v612, %v611
        %v618 = vpack.c.b16 %v614, %v613
        %v624 = vsel %vm417, %v589, 0
        %626 = vmatprep.subr.bf16.mxu0 0
        %627 = vmatpush1.bf16.msra.mxu0 0
        %628 = vmatprep.subr.bf16.mxu0 0
        %629 = vmatpush1.bf16.msra.mxu0 0
        %630 = vmatprep.subr.bf16.mxu0 0
        %631 = vmatpush1.bf16.msra.mxu0 0
        %632 = vmatprep.subr.bf16.mxu0 0
        %633 = vmatpush1.bf16.msra.mxu0 0
        %634 = vmatprep.subr.bf16.mxu0 0
        %635 = vmatpush1.bf16.msra.mxu0 %v618
        %636 = vmatprep.subr.bf16.mxu0 0
        %637 = vmatpush1.bf16.msra.mxu0 %v617
        %638 = vmatprep.subr.bf16.mxu0 0
        %639 = vmatpush1.bf16.msra.mxu0 %v616
        %640 = vmatprep.subr.bf16.mxu0 0
        %641 = vmatpush1.bf16.msra.mxu0 %v615
        %642 = vmatprep.subr.bf16.mxu0 0
        %643 = vmatpush2.bf16.msra.mxu0 0
        %644 = vmatprep.subr.bf16.mxu0 0
        %645 = vmatpush2.bf16.msra.mxu0 0
        %646 = vmatprep.subr.bf16.mxu0 0
        %647 = vmatpush2.bf16.msra.mxu0 0
        %648 = vmatprep.subr.bf16.mxu0 0
        %649 = vmatpush2.bf16.msra.mxu0 0
        %650 = vmatprep.subr.bf16.mxu0 0
        %651 = vmatpush2.bf16.msra.mxu0 0
        %652 = vmatprep.subr.bf16.mxu0 0
        %653 = vmatpush2.bf16.msra.mxu0 0
        %654 = vmatprep.subr.bf16.mxu0 0
        %655 = vmatpush2.bf16.msra.mxu0 0
        %656 = vmatprep.subr.bf16.mxu0 0
        %657 = vmatpush2.bf16.msra.mxu0 0
        %658 = vmatprep.mubr.bf16.mxu0 0
        %659 = vmatmul.mubr.bf16.gmra.mxu0 %v624
        %v660 = vpop.f32.mrf.mxu0
        %v661 = vadd.f32 0.0, %v660
        %v662 = vpop.f32.mrf.mxu0
        %v663 = vpop.f32.mrf.mxu0
        %v664 = vadd.f32 0.0, %v663
        %v665 = vpop.f32.mrf.mxu0
        %666 = vdwg.mxu0
        %v667 = vadd.f32 %v581, %v661
        %v668 = vadd.f32 %v584, %v664
        %v669 = vld [vmem:[%s4] sm:$0x1]
        %v671 = vlaneseq
        %v672 = vshrl.u32 %v671, 7
        %v673 = vsub.s32 0, %v672
        %v674 = vrot.slane %v669, %v673
        %v676 = vadd.f32 %v667, %v674
        %v677 = vadd.f32 %v668, %v674
        %v678 = vsub.f32 0.0, %v676
        %v679 = vsub.f32 0.0, %v677
        %v680 = vmul.f32 %v678, 1.442695
        %v681 = vpow.pop %v680
        %v682 = vmul.f32 %v679, 1.442695
        %v683 = vpow.pop %v682
        %v684 = vadd.f32 %v681, 1.0
        %v685 = vadd.f32 %v683, 1.0
        %v686 = vrcp.pop %v684
        %v687 = vrcp.pop %v685
        %v688 = vmul.f32 %v676, %v686
        %v689 = vmul.f32 %v677, %v687
        %vm693 = vcmask 1046528
        %v694 = vrot.slane %v275, 1
        %v695 = vrot.slane %v276, 1
        %v696 = vsel %vm693, %v694, %v695
        %v697 = vrot.slane %v277, 1
        %v698 = vsel %vm693, %v695, %v697
        %v701 = vadd.f32 %v688, %v696
        %v702 = vadd.f32 %v689, %v698
        %703 = vst [vmem:[%s190] sm:$0xff] %v701
        %704 = vst [vmem:[%s190 + $0x8] sm:$0xff] %v702
        %s705 = sand.u32 %s125, 1
        %s706 = scalar_lea.sflag [#allocation6], %s705
        %s707 = sand.u32 %s125, 1
        %s708 = smul.addr %s707, 16
        %s709 = scalar_lea.vmem [#allocation5], %s708
        // Predicated region
        $region82: #{tpu_custom_call.1} parent=35 // pred_check
          %p710 = pneg %p135
        $region83: #{tpu_custom_call.1} parent=35 // pred_check_branch
          %712 = sbr.rel (%p710) target = $region85
        $region84: #{tpu_custom_call.1} parent=35 // pred_region
          %s713 = smul.u32 2, %s24
          %s715 = ssub.s32 256, 256
          %716 = vsyncadd %s706, %s715
          %s717 = smul.addr %s23, 2
          %s718 = sadd.s32 %s713, %s717
          %s719 = smul.addr %s718, 128
          %s720 = scalar_lea.hbm %s5, %s719
          %s721 = sshll.u32 %s709, 4
          %s722 = int_to_ptr.vmem [resolvable:$true] %s721
          %727 = dma.vmem_to_hbm [thread:$0]  %s722, 256, %s720, %s706, 128, 128, 8
        $region85: #{tpu_custom_call.1} parent=35 // pred_fallthru
          _
      $region36: #{tpu_custom_call.1} parent=5 // pred_fallthru
        _
      %p728 = scmp.le.s32.totalorder 2, %s14
      // Predicated region
      $region86: #{tpu_custom_call.1} parent=5 // pred_check
        %p729 = pneg %p728
      $region87: #{tpu_custom_call.1} parent=5 // pred_check_branch
        %731 = sbr.rel (%p729) target = $region89
      $region88: #{tpu_custom_call.1} parent=5 // pred_region
        %s732 = ssub.s32 %s14, 2
        // Predicated region
        $region90: #{tpu_custom_call.1} parent=88 // pred_check
          %p733 = pneg %p141
        $region91: #{tpu_custom_call.1} parent=88 // pred_check_branch
          %735 = sbr.rel (%p733) target = $region93
        $region92: #{tpu_custom_call.1} parent=88 // pred_region
          %s736 = sand.u32 %s126, 1
          %s737 = scalar_lea.sflag [#allocation6], %s736
          %s738 = sand.u32 %s126, 1
          %s739 = smul.addr %s738, 16
          %s740 = scalar_lea.vmem [#allocation5], %s739
          %741 = dma.done %s737, 256
        $region93: #{tpu_custom_call.1} parent=88 // pred_fallthru
          _
      $region89: #{tpu_custom_call.1} parent=5 // pred_fallthru
        _
    $region6: #{tpu_custom_call.1} parent=1 // loop_footer
      %s18 = sadd.s32 1, %s14
    $region7: #{tpu_custom_call.1} parent=1 // loop_footer_branch
      %13 = sbr.rel target = $region3
    $region8: #{tpu_custom_call.1} parent=1 // loop_exit
      _
    %742 = vsyncpa [#allocation6], 1
    %s743 = scalar_lea.sflag [#allocation6], 1
    %744 = vsyncpa %s743, 1
  %745 = vsyncmov [#allocation4]
  %s746 = vpop.sfrf %745
  %p747 = scmp.eq.s32.totalorder %s746, 0
  %p748 = pneg %p747
  %750 = shalt.err (%p748)
  %s751 = scalar_lea.sflag [#allocation4], 1
  %752 = vsyncmov %s751
  %s753 = vpop.sfrf %752
  %p754 = scmp.eq.s32.totalorder %s753, 0
  %p755 = pneg %p754
  %757 = shalt.err (%p755)

</llo_original>
